<compile_context>
chip_gen: v6e
topology: v6e:2x2x1
jax: 0.10.0
libtpu: 0.0.40
codegen_flags: <defaults>
</compile_context>

<pallas_src>
import functools

import numpy as np
import jax
import jax.numpy as jnp
from jax.experimental import pallas as pl
from jax.experimental.pallas import tpu as pltpu


def cartesian_power_py(values, power):
    """Python mirror of the torch cartesian_power helper (same row ordering)."""
    if power == 0:
        return [()]
    prev = cartesian_power_py(values, power - 1)
    return [row + (x,) for x in values for row in prev]


def _round_up(a, b):
    return -(-a // b) * b


def _build_selection_tables(arity, groups):
    """Compile-time +-1/0 selection tables for the fused candidate-expansion matmuls.

    Returns:
      smin: (G*arity, arity*LP)  block j, column g*P+p selects c_j*a_j (or duplicates an
            existing nonzero candidate when c_j == 0, so the min is unaffected).
      smax: (G*arity, arity*LP)  block j, column g*P+p selects |a_j| iff c_j == 0.
      p3:   3**arity
      lp:   per-block lane width = round_up(G*P, 128)  (128-aligned slice boundaries)
    """
    coords = cartesian_power_py([-1.0, 0.0, 1.0], arity)
    p3 = len(coords)
    gp = groups * p3
    lp = _round_up(gp, 128)
    ga = groups * arity
    smin = np.zeros((ga, arity * lp), np.float32)
    smax = np.zeros((ga, arity * lp), np.float32)
    for p, row in enumerate(coords):
        nz = [j for j in range(arity) if row[j] != 0.0]
        for g in range(groups):
            col = g * p3 + p
            for j in range(arity):
                c = j * lp + col
                if row[j] != 0.0:
                    smin[g * arity + j, c] = row[j]
                else:
                    if nz:  # duplicate a nonzero candidate -> min unchanged
                        smin[g * arity + nz[0], c] = row[nz[0]]
                    # all-zero coordinate row: candidate stays 0 -> W column is exactly 0
                    smax[g * arity + j, c] = 1.0
    return smin, smax, p3, lp


def _hoact_b_kernel(x_ref, smin_ref, smax_ref, pbd_ref, o_ref, *, arity, lane_pad):
    """One grid step = one tile of TN rows, all groups at once.

    x_ref:    (TN, G*arity)          activations (group-major, arity minor)
    smin_ref: (G*arity, arity*LP)    stacked min-path selection matrix (+-1/0)
    smax_ref: (G*arity, arity*LP)    stacked max-path selection matrix (0/1)
    pbd_ref:  (LP, G*out_dim)        block-diagonal params (act_factor folded, zero-padded rows)
    o_ref:    (TN, G*out_dim)        lane-dense output tile
    """
    lp = lane_pad
    x = x_ref[...]
    ax = jnp.abs(x)

    # Fused candidate expansion: two tiny-K matmuls total (was 2*arity).
    cmin = jnp.dot(x, smin_ref[...], preferred_element_type=jnp.float32)   # (TN, arity*LP)
    cmax = jnp.dot(ax, smax_ref[...], preferred_element_type=jnp.float32)  # (TN, arity*LP)

    # 128-aligned static slices -> pure VPU min/max reductions over the arity blocks.
    w_min = cmin[:, 0:lp]
    w_max = cmax[:, 0:lp]
    for j in range(1, arity):
        w_min = jnp.minimum(w_min, cmin[:, j * lp:(j + 1) * lp])
        w_max = jnp.maximum(w_max, cmax[:, j * lp:(j + 1) * lp])

    w = jnp.maximum(w_min - w_max, 0.0)  # (TN, LP): exact torch coefs / exact zeros
    out = jnp.dot(w, pbd_ref[...], preferred_element_type=jnp.float32)
    o_ref[...] = out.astype(o_ref.dtype)


def high_order_activation_b(X, params, *, arity, input_groups, out_dim,
                            act_factor=1.0, tile_n=2048):
    """Forward pass of HighOrderActivationB.

    X:      (N, input_groups * arity) float32
    params: (input_groups, 3**arity, out_dim) float32
    returns (N, input_groups * out_dim) float32
    """
    n, feat = X.shape
    g = input_groups
    assert feat == g * arity
    assert params.shape == (g, 3 ** arity, out_dim)

    smin_np, smax_np, p3, lp = _build_selection_tables(arity, g)

    X = jnp.asarray(X, jnp.float32)
    params = jnp.asarray(params, jnp.float32)
    smin = jnp.asarray(smin_np)
    smax = jnp.asarray(smax_np)

    # Block-diagonal params (LP, G*out_dim) with act_factor folded in; padded rows are 0.
    eye_g = jnp.eye(g, dtype=jnp.float32)
    pbd = (params[:, :, None, :] * eye_g[:, None, :, None]).reshape(g * p3, g * out_dim)
    pbd = pbd * jnp.float32(act_factor)
    if lp > g * p3:
        pbd = jnp.pad(pbd, ((0, lp - g * p3), (0, 0)))

    # Row tiling: (8,.)-aligned blocks; clamp so the grid has >=2 steps whenever possible
    # (keeps both v7x TensorCores fed via the "parallel" axis). Padded rows -> exact zeros.
    tn_cap = _round_up(max(-(-n // 2), 8), 8)
    tn = max(8, min(_round_up(tile_n, 8), tn_cap))
    n_pad = _round_up(n, tn)
    if n_pad != n:
        X = jnp.pad(X, ((0, n_pad - n), (0, 0)))

    ga = g * arity
    gout = g * out_dim
    grid_steps = n_pad // tn

    kernel = functools.partial(_hoact_b_kernel, arity=arity, lane_pad=lp)

    flops = 2 * n_pad * (ga * (2 * arity * lp) + lp * gout)
    bytes_accessed = 4 * (n_pad * ga + n_pad * gout
                          + smin.size + smax.size + pbd.size)

    out = pl.pallas_call(
        kernel,
        out_shape=jax.ShapeDtypeStruct((n_pad, gout), jnp.float32),
        grid_spec=pltpu.PrefetchScalarGridSpec(
            num_scalar_prefetch=0,
            grid=(grid_steps,),
            in_specs=[
                pl.BlockSpec((tn, ga), lambda i: (i, 0)),
                pl.BlockSpec((ga, arity * lp), lambda i: (0, 0)),
                pl.BlockSpec((ga, arity * lp), lambda i: (0, 0)),
                pl.BlockSpec((lp, gout), lambda i: (0, 0)),
            ],
            out_specs=pl.BlockSpec((tn, gout), lambda i: (i, 0)),
        ),
        compiler_params=pltpu.CompilerParams(
            dimension_semantics=("parallel",),
            vmem_limit_bytes=48 * 1024 * 1024,
        ),
        cost_estimate=pl.CostEstimate(
            flops=flops, transcendentals=0, bytes_accessed=bytes_accessed),
    )(X, smin, smax, pbd)

    return out[:n]


# ------------------------ pure-JAX reference (torch mirror) ------------------------ #

def high_order_act_b_ref(A, params):
    """Direct jnp transcription of the PyTorch high_order_act_b (sort + gather)."""
    arity = A.shape[2]
    ref_ind = sum(3 ** i for i in range(arity))
    A_abs = jnp.abs(A)
    A_ind = jnp.argsort(A_abs, axis=2)
    A_sort = jnp.take_along_axis(A_abs, A_ind, axis=2)
    A_sgn = jnp.where(A >= 0, 1, -1)
    A_sgn = jnp.take_along_axis(A_sgn, A_ind, axis=2)
    A_diff = A_sort[:, :, 1:] - A_sort[:, :, :-1]
    coef = jnp.concatenate([A_sort[:, :, 0:1], A_diff], axis=2)
    pow3 = jnp.asarray([3 ** i for i in range(arity)], jnp.int32)
    terms = A_sgn * jnp.take(pow3, A_ind)
    params_A_ind = jnp.flip(jnp.cumsum(jnp.flip(terms, axis=2), axis=2), axis=2) + ref_ind
    ind0b = jnp.arange(params.shape[0])[:, None, None]
    ind1b = jnp.transpose(params_A_ind, (1, 0, 2))
    params_gather = params[ind0b, ind1b, :]                  # (G, N, arity, out_dim)
    return jnp.einsum('jikl,ijk->ijl', params_gather, coef)  # (N, G, out_dim)


# ----------------------------------- main ----------------------------------- #

if __name__ == "__main__":
    key = jax.random.PRNGKey(0)
    kx, kp, kx2, kp2 = jax.random.split(key, 4)

    # ---- Config A: arity=2, G=4, out_dim=32 (G*out_dim = 128 lanes), batch=8 ----
    arity, groups, out_dim, batch = 2, 4, 32, 8
    act_init, act_factor = 1.0, 1.0
    P = 3 ** arity
    coords = cartesian_power_py([-1.0, 0.0, 1.0], arity)
    row_max = jnp.asarray([max(c) for c in coords], jnp.float32)
    params_init = jnp.broadcast_to(row_max[None, :, None] * (act_init / act_factor),
                                   (groups, P, out_dim)).astype(jnp.float32)

    X = jax.random.normal(kx, (batch, groups * arity), dtype=jnp.float32)
    out = jax.block_until_ready(high_order_activation_b(
        X, params_init, arity=arity, input_groups=groups, out_dim=out_dim,
        act_factor=act_factor))
    A = X.reshape(batch, groups, arity)
    ref = (high_order_act_b_ref(A, params_init)
           .reshape(batch, groups * out_dim) * act_factor)
    assert out.shape == (batch, groups * out_dim)
    err_a = float(jnp.max(jnp.abs(out - ref)))

    # Stronger check: random params, same config.
    params_rand = jax.random.normal(kp, (groups, P, out_dim), dtype=jnp.float32)
    out2 = jax.block_until_ready(high_order_activation_b(
        X, params_rand, arity=arity, input_groups=groups, out_dim=out_dim,
        act_factor=act_factor))
    ref2 = (high_order_act_b_ref(A, params_rand)
            .reshape(batch, groups * out_dim) * act_factor)
    err_b = float(jnp.max(jnp.abs(out2 - ref2)))

    # ---- Config B: arity=3, G=2, out_dim=64, batch=300 -> multi-tile grid with a
    #      zero-padded remainder tile (tile_n=128 -> 3 grid steps), act_factor != 1. ----
    arity3, groups3, out_dim3, batch3 = 3, 2, 64, 300
    P3 = 3 ** arity3
    X3 = jax.random.normal(kx2, (batch3, groups3 * arity3), dtype=jnp.float32)
    params3 = jax.random.normal(kp2, (groups3, P3, out_dim3), dtype=jnp.float32)
    out3 = jax.block_until_ready(high_order_activation_b(
        X3, params3, arity=arity3, input_groups=groups3, out_dim=out_dim3,
        act_factor=0.5, tile_n=128))
    A3 = X3.reshape(batch3, groups3, arity3)
    ref3 = (high_order_act_b_ref(A3, params3)
            .reshape(batch3, groups3 * out_dim3) * 0.5)
    assert out3.shape == (batch3, groups3 * out_dim3)
    err_c = float(jnp.max(jnp.abs(out3 - ref3)))

    # f32 MXU passes give ~1e-6 abs error here; 1e-3 leaves margin while still catching
    # any accidental bf16 demotion (which would be ~1e-2).
    assert err_a < 1e-3 and err_b < 1e-3 and err_c < 1e-3, (err_a, err_b, err_c)
    print("KERNEL_OK")
</pallas_src>

<mosaic_0001>
module attributes {stable_mosaic.version = 11 : i64} {
  func.func @_hoact_b_kernel(%arg0: i32, %arg1: memref<8x8xf32, #tpu.memory_space<vmem>>, %arg2: memref<8x256xf32, #tpu.memory_space<vmem>>, %arg3: memref<8x256xf32, #tpu.memory_space<vmem>>, %arg4: memref<128x128xf32, #tpu.memory_space<vmem>>, %arg5: memref<8x128xf32, #tpu.memory_space<vmem>>) attributes {dimension_semantics = [#tpu.dimension_semantics<parallel>], iteration_bounds = array<i64: 1>, scalar_prefetch = 0 : i64, scratch_operands = 0 : i64, tpu.core_type = #tpu.core_type<tc>, window_params = [{transform_indices = @transform_0, window_bounds = array<i64: 8, 8>}, {pipeline_mode = #tpu.pipeline_mode<synchronous>, transform_indices = @transform_1, window_bounds = array<i64: 8, 256>}, {pipeline_mode = #tpu.pipeline_mode<synchronous>, transform_indices = @transform_2, window_bounds = array<i64: 8, 256>}, {pipeline_mode = #tpu.pipeline_mode<synchronous>, transform_indices = @transform_3, window_bounds = array<i64: 128, 128>}, {transform_indices = @transform_4, window_bounds = array<i64: 8, 128>}]} {
    %c0 = arith.constant 0 : index
    %c0_0 = arith.constant 0 : index
    %0 = vector.load %arg1[%c0, %c0_0] : memref<8x8xf32, #tpu.memory_space<vmem>>, vector<8x8xf32>
    %1 = math.absf %0 : vector<8x8xf32>
    %c0_1 = arith.constant 0 : index
    %c0_2 = arith.constant 0 : index
    %2 = vector.load %arg2[%c0_1, %c0_2] : memref<8x256xf32, #tpu.memory_space<vmem>>, vector<8x256xf32>
    %cst = arith.constant dense<0.000000e+00> : vector<8x256xf32>
    %3 = tpu.matmul %0, %2, %cst {dimension_numbers = #tpu.dot_dimension_numbers<[1], [0], [0], [1], [0, 0, 1, 1], [], []>} : vector<8x8xf32>, vector<8x256xf32>, vector<8x256xf32> -> vector<8x256xf32>
    %c0_3 = arith.constant 0 : index
    %c0_4 = arith.constant 0 : index
    %4 = vector.load %arg3[%c0_3, %c0_4] : memref<8x256xf32, #tpu.memory_space<vmem>>, vector<8x256xf32>
    %cst_5 = arith.constant dense<0.000000e+00> : vector<8x256xf32>
    %5 = tpu.matmul %1, %4, %cst_5 {dimension_numbers = #tpu.dot_dimension_numbers<[1], [0], [0], [1], [0, 0, 1, 1], [], []>} : vector<8x8xf32>, vector<8x256xf32>, vector<8x256xf32> -> vector<8x256xf32>
    %6 = vector.extract_strided_slice %3 {offsets = [0, 0], sizes = [8, 128], strides = [1, 1]} : vector<8x256xf32> to vector<8x128xf32>
    %7 = vector.extract_strided_slice %5 {offsets = [0, 0], sizes = [8, 128], strides = [1, 1]} : vector<8x256xf32> to vector<8x128xf32>
    %8 = vector.extract_strided_slice %3 {offsets = [0, 128], sizes = [8, 128], strides = [1, 1]} : vector<8x256xf32> to vector<8x128xf32>
    %9 = arith.minimumf %6, %8 : vector<8x128xf32>
    %10 = vector.extract_strided_slice %5 {offsets = [0, 128], sizes = [8, 128], strides = [1, 1]} : vector<8x256xf32> to vector<8x128xf32>
    %11 = arith.maximumf %7, %10 : vector<8x128xf32>
    %12 = arith.subf %9, %11 : vector<8x128xf32>
    %cst_6 = arith.constant 0.000000e+00 : f32
    %13 = vector.broadcast %cst_6 : f32 to vector<8x128xf32>
    %14 = arith.maximumf %12, %13 : vector<8x128xf32>
    %c0_7 = arith.constant 0 : index
    %c0_8 = arith.constant 0 : index
    %15 = vector.load %arg4[%c0_7, %c0_8] : memref<128x128xf32, #tpu.memory_space<vmem>>, vector<128x128xf32>
    %cst_9 = arith.constant dense<0.000000e+00> : vector<8x128xf32>
    %16 = tpu.matmul %14, %15, %cst_9 {dimension_numbers = #tpu.dot_dimension_numbers<[1], [0], [0], [1], [0, 0, 1, 1], [], []>} : vector<8x128xf32>, vector<128x128xf32>, vector<8x128xf32> -> vector<8x128xf32>
    %c0_10 = arith.constant 0 : index
    %c0_11 = arith.constant 0 : index
    %17 = vector.load %arg5[%c0_10, %c0_11] : memref<8x128xf32, #tpu.memory_space<vmem>>, vector<8x128xf32>
    tpu.vector_store %arg5[%c0_10, %c0_11], %16 {strides = array<i32>} : memref<8x128xf32, #tpu.memory_space<vmem>>, vector<8x128xf32>,
    return
  }
  func.func @transform_0(%arg0: i32) -> (i32, i32) {
    %c0_i32 = arith.constant 0 : i32
    %c0_i32_0 = arith.constant 0 : i32
    return %arg0, %c0_i32 : i32, i32
  }
  func.func @transform_1(%arg0: i32) -> (i32, i32) {
    %c0_i32 = arith.constant 0 : i32
    %c0_i32_0 = arith.constant 0 : i32
    %c0_i32_1 = arith.constant 0 : i32
    return %c0_i32, %c0_i32_0 : i32, i32
  }
  func.func @transform_2(%arg0: i32) -> (i32, i32) {
    %c0_i32 = arith.constant 0 : i32
    %c0_i32_0 = arith.constant 0 : i32
    %c0_i32_1 = arith.constant 0 : i32
    return %c0_i32, %c0_i32_0 : i32, i32
  }
  func.func @transform_3(%arg0: i32) -> (i32, i32) {
    %c0_i32 = arith.constant 0 : i32
    %c0_i32_0 = arith.constant 0 : i32
    %c0_i32_1 = arith.constant 0 : i32
    return %c0_i32, %c0_i32_0 : i32, i32
  }
  func.func @transform_4(%arg0: i32) -> (i32, i32) {
    %c0_i32 = arith.constant 0 : i32
    %c0_i32_0 = arith.constant 0 : i32
    return %arg0, %c0_i32 : i32, i32
  }
}

</mosaic_0001>

<llo_original>
// kernel: tpu_custom_call.1
$region0: #{tpu_custom_call.1}
  #allocation0 [shape = 'u32[]', space=smem, size = 0x4, offset = 0x4, fixed_abs, tag = 'smem constant byte address 0x4 - core index']
  #allocation1 [shape = 'u32[144,128]{1,0:T(1,128)}', space=vmem, size = 0x12000, scoped, tag = 'internal scratch']
  %s0 = inlined_call_operand.hbm [shape: f32[8,8], index: 0, kind: input, shape index: {}]
  %s1 = inlined_call_operand.hbm [shape: f32[8,256], index: 1, kind: input, shape index: {}]
  %s2 = inlined_call_operand.hbm [shape: f32[8,256], index: 2, kind: input, shape index: {}]
  %s3 = inlined_call_operand.hbm [shape: f32[128,128], index: 3, kind: input, shape index: {}]
  %s4 = inlined_call_operand.hbm [shape: f32[8,128], index: 4, kind: output, shape index: {}]
  %s5 = sld [smem:[#allocation0]]
  $region42: #{tpu_custom_call.1} parent=0
    _
  %s7 = ssub.s32 1, %s5
  %s8 = scalar_select 0, %s7, %s5
  $region1: #{tpu_custom_call.1} parent=0
    #allocation2 [shape = 'u8[4096]{0}', space=vmem, size = 0x1000, scoped, tag = 'input window, operand 0, single buffered']
    #allocation3 [shape = 's32[1]{0}', space=sflag, size = 0x4, scoped, tag = 'scoped memory for tpu_custom_call.1']
    #allocation4 [shape = 's32[1]{0}', space=sflag, size = 0x4, scoped, tag = 'scoped memory for tpu_custom_call.1']
    #allocation5 [shape = 'u8[8192]{0}', space=vmem, size = 0x2000, scoped, tag = 'input window, operand 1, single buffered']
    #allocation6 [shape = 's32[1]{0}', space=sflag, size = 0x4, scoped, tag = 'scoped memory for tpu_custom_call.1']
    #allocation7 [shape = 'u8[8192]{0}', space=vmem, size = 0x2000, scoped, tag = 'input window, operand 2, single buffered']
    #allocation8 [shape = 'u8[65536]{0}', space=vmem, size = 0x10000, scoped, tag = 'input window, operand 3, single buffered']
    #allocation9 [shape = 's32[1]{0}', space=sflag, size = 0x4, scoped, tag = 'scoped memory for tpu_custom_call.1']
    #allocation10 [shape = 'u8[4096]{0}', space=vmem, size = 0x1000, scoped, tag = 'output window, operand 0, single buffered']
    %9 = vsyncpa [#allocation3], 0
    %10 = vsyncpa [#allocation6], 0
    %11 = vsyncpa [#allocation9], 0
    %12 = vsyncpa [#allocation4], 0
    // Predicated region
    $region2: #{tpu_custom_call.1} parent=1 // pred_check
      _
    $region3: #{tpu_custom_call.1} parent=1 // pred_check_branch
      %14 = sbr.rel (0) target = $region5
    $region4: #{tpu_custom_call.1} parent=1 // pred_region
      %s16 = ssub.s32 128, 128
      %17 = vsyncadd [#allocation3], %s16
      %s19 = sshll.u32 [#allocation2], 4
      %s20 = int_to_ptr.vmem [resolvable:$true] %s19
      %22 = dma.hbm_to_vmem [thread:$0]  %s0, 128, %s20, [#allocation3]
    $region5: #{tpu_custom_call.1} parent=1 // pred_fallthru
      _
    // Predicated region
    $region6: #{tpu_custom_call.1} parent=1 // pred_check
      _
    $region7: #{tpu_custom_call.1} parent=1 // pred_check_branch
      %24 = sbr.rel (0) target = $region9
    $region8: #{tpu_custom_call.1} parent=1 // pred_region
      %s26 = ssub.s32 256, 256
      %27 = vsyncadd [#allocation6], %s26
      %s29 = sshll.u32 [#allocation5], 4
      %s30 = int_to_ptr.vmem [resolvable:$true] %s29
      %32 = dma.hbm_to_vmem [thread:$0]  %s1, 256, %s30, [#allocation6]
    $region9: #{tpu_custom_call.1} parent=1 // pred_fallthru
      _
    // Predicated region
    $region10: #{tpu_custom_call.1} parent=1 // pred_check
      _
    $region11: #{tpu_custom_call.1} parent=1 // pred_check_branch
      %34 = sbr.rel (0) target = $region13
    $region12: #{tpu_custom_call.1} parent=1 // pred_region
      %s36 = ssub.s32 256, 256
      %37 = vsyncadd [#allocation6], %s36
      %s39 = sshll.u32 [#allocation7], 4
      %s40 = int_to_ptr.vmem [resolvable:$true] %s39
      %42 = dma.hbm_to_vmem [thread:$0]  %s2, 256, %s40, [#allocation6]
    $region13: #{tpu_custom_call.1} parent=1 // pred_fallthru
      _
    // Predicated region
    $region14: #{tpu_custom_call.1} parent=1 // pred_check
      _
    $region15: #{tpu_custom_call.1} parent=1 // pred_check_branch
      %44 = sbr.rel (0) target = $region17
    $region16: #{tpu_custom_call.1} parent=1 // pred_region
      %s46 = ssub.s32 2048, 2048
      %47 = vsyncadd [#allocation9], %s46
      %s48 = sshll.u32 [#allocation8], 4
      %s49 = int_to_ptr.vmem [resolvable:$true] %s48
      %54 = dma.hbm_to_vmem [thread:$0]  %s3, 2048, %s49, [#allocation9], 128, 128, 8
    $region17: #{tpu_custom_call.1} parent=1 // pred_fallthru
      _
    // Predicated region
    $region18: #{tpu_custom_call.1} parent=1 // pred_check
      _
    $region19: #{tpu_custom_call.1} parent=1 // pred_check_branch
      %56 = sbr.rel (0) target = $region21
    $region20: #{tpu_custom_call.1} parent=1 // pred_region
      %57 = dma.done [#allocation3], 128
    $region21: #{tpu_custom_call.1} parent=1 // pred_fallthru
      _
    // Predicated region
    $region22: #{tpu_custom_call.1} parent=1 // pred_check
      _
    $region23: #{tpu_custom_call.1} parent=1 // pred_check_branch
      %59 = sbr.rel (0) target = $region25
    $region24: #{tpu_custom_call.1} parent=1 // pred_region
      %60 = dma.done [#allocation6], 256
    $region25: #{tpu_custom_call.1} parent=1 // pred_fallthru
      _
    // Predicated region
    $region26: #{tpu_custom_call.1} parent=1 // pred_check
      _
    $region27: #{tpu_custom_call.1} parent=1 // pred_check_branch
      %62 = sbr.rel (0) target = $region29
    $region28: #{tpu_custom_call.1} parent=1 // pred_region
      %63 = dma.done [#allocation6], 256
    $region29: #{tpu_custom_call.1} parent=1 // pred_fallthru
      _
    // Predicated region
    $region30: #{tpu_custom_call.1} parent=1 // pred_check
      _
    $region31: #{tpu_custom_call.1} parent=1 // pred_check_branch
      %65 = sbr.rel (0) target = $region33
    $region32: #{tpu_custom_call.1} parent=1 // pred_region
      %66 = dma.done [#allocation9], 2048
    $region33: #{tpu_custom_call.1} parent=1 // pred_fallthru
      _
    %v67 = vld [vmem:[#allocation2] sm:$0xff]
    %v68 = vand.u32 2147483647, %v67
    %v69 = vld [vmem:[#allocation5] sm:$0xff]
    %v70 = vld [vmem:[#allocation5 + $0x8] sm:$0xff]
    %vm71 = vcmask 64512
    %v73 = vsel %vm71, %v67, 0
    %75 = vmatprep.subr.mxu0 0.0
    %76 = vmatpush1.msra.mxu0 0.0
    %77 = vmatprep.subr.mxu0 0.0
    %78 = vmatpush1.msra.mxu0 0.0
    %79 = vmatprep.subr.mxu0 0.0
    %80 = vmatpush1.msra.mxu0 0.0
    %81 = vmatprep.subr.mxu0 0.0
    %82 = vmatpush1.msra.mxu0 0.0
    %83 = vmatprep.subr.mxu0 0.0
    %84 = vmatpush1.msra.mxu0 0.0
    %85 = vmatprep.subr.mxu0 0.0
    %86 = vmatpush1.msra.mxu0 0.0
    %87 = vmatprep.subr.mxu0 0.0
    %88 = vmatpush1.msra.mxu0 0.0
    %89 = vmatprep.subr.mxu0 0.0
    %90 = vmatpush1.msra.mxu0 0.0
    %91 = vmatprep.subr.mxu0 0.0
    %92 = vmatpush1.msra.mxu0 0.0
    %93 = vmatprep.subr.mxu0 0.0
    %94 = vmatpush1.msra.mxu0 0.0
    %95 = vmatprep.subr.mxu0 0.0
    %96 = vmatpush1.msra.mxu0 0.0
    %97 = vmatprep.subr.mxu0 0.0
    %98 = vmatpush1.msra.mxu0 0.0
    %99 = vmatprep.subr.mxu0 0.0
    %100 = vmatpush1.msra.mxu0 0.0
    %101 = vmatprep.subr.mxu0 0.0
    %102 = vmatpush1.msra.mxu0 0.0
    %103 = vmatprep.subr.mxu0 0.0
    %104 = vmatpush1.msra.mxu0 0.0
    %105 = vmatprep.subr.mxu0 %v70
    %106 = vmatpush1.msra.mxu0 %v69
    %107 = vmatprep.subr.mxu0 0.0
    %108 = vmatpush2.msra.mxu0 0.0
    %109 = vmatprep.subr.mxu0 0.0
    %110 = vmatpush2.msra.mxu0 0.0
    %111 = vmatprep.subr.mxu0 0.0
    %112 = vmatpush2.msra.mxu0 0.0
    %113 = vmatprep.subr.mxu0 0.0
    %114 = vmatpush2.msra.mxu0 0.0
    %115 = vmatprep.subr.mxu0 0.0
    %116 = vmatpush2.msra.mxu0 0.0
    %117 = vmatprep.subr.mxu0 0.0
    %118 = vmatpush2.msra.mxu0 0.0
    %119 = vmatprep.subr.mxu0 0.0
    %120 = vmatpush2.msra.mxu0 0.0
    %121 = vmatprep.subr.mxu0 0.0
    %122 = vmatpush2.msra.mxu0 0.0
    %123 = vmatprep.subr.mxu0 0.0
    %124 = vmatpush2.msra.mxu0 0.0
    %125 = vmatprep.subr.mxu0 0.0
    %126 = vmatpush2.msra.mxu0 0.0
    %127 = vmatprep.subr.mxu0 0.0
    %128 = vmatpush2.msra.mxu0 0.0
    %129 = vmatprep.subr.mxu0 0.0
    %130 = vmatpush2.msra.mxu0 0.0
    %131 = vmatprep.subr.mxu0 0.0
    %132 = vmatpush2.msra.mxu0 0.0
    %133 = vmatprep.subr.mxu0 0.0
    %134 = vmatpush2.msra.mxu0 0.0
    %135 = vmatprep.subr.mxu0 0.0
    %136 = vmatpush2.msra.mxu0 0.0
    %137 = vmatprep.subr.mxu0 0.0
    %138 = vmatpush2.msra.mxu0 0.0
    %139 = vmatprep.mubr.f32.mxu0 0.0
    %140 = vmatmul.mubr.f32.gmra.mxu0 %v73
    %v141 = vpop.f32.mrf.mxu0
    %v142 = vadd.f32 0.0, %v141
    %v143 = vpop.f32.mrf.mxu0
    %v144 = vadd.f32 0.0, %v143
    %145 = vdwg.mxu0
    %v146 = vld [vmem:[#allocation7] sm:$0xff]
    %v147 = vld [vmem:[#allocation7 + $0x8] sm:$0xff]
    %v149 = vsel %vm71, %v68, 0
    %151 = vmatprep.subr.mxu0 0.0
    %152 = vmatpush1.msra.mxu0 0.0
    %153 = vmatprep.subr.mxu0 0.0
    %154 = vmatpush1.msra.mxu0 0.0
    %155 = vmatprep.subr.mxu0 0.0
    %156 = vmatpush1.msra.mxu0 0.0
    %157 = vmatprep.subr.mxu0 0.0
    %158 = vmatpush1.msra.mxu0 0.0
    %159 = vmatprep.subr.mxu0 0.0
    %160 = vmatpush1.msra.mxu0 0.0
    %161 = vmatprep.subr.mxu0 0.0
    %162 = vmatpush1.msra.mxu0 0.0
    %163 = vmatprep.subr.mxu0 0.0
    %164 = vmatpush1.msra.mxu0 0.0
    %165 = vmatprep.subr.mxu0 0.0
    %166 = vmatpush1.msra.mxu0 0.0
    %167 = vmatprep.subr.mxu0 0.0
    %168 = vmatpush1.msra.mxu0 0.0
    %169 = vmatprep.subr.mxu0 0.0
    %170 = vmatpush1.msra.mxu0 0.0
    %171 = vmatprep.subr.mxu0 0.0
    %172 = vmatpush1.msra.mxu0 0.0
    %173 = vmatprep.subr.mxu0 0.0
    %174 = vmatpush1.msra.mxu0 0.0
    %175 = vmatprep.subr.mxu0 0.0
    %176 = vmatpush1.msra.mxu0 0.0
    %177 = vmatprep.subr.mxu0 0.0
    %178 = vmatpush1.msra.mxu0 0.0
    %179 = vmatprep.subr.mxu0 0.0
    %180 = vmatpush1.msra.mxu0 0.0
    %181 = vmatprep.subr.mxu0 %v147
    %182 = vmatpush1.msra.mxu0 %v146
    %183 = vmatprep.subr.mxu0 0.0
    %184 = vmatpush2.msra.mxu0 0.0
    %185 = vmatprep.subr.mxu0 0.0
    %186 = vmatpush2.msra.mxu0 0.0
    %187 = vmatprep.subr.mxu0 0.0
    %188 = vmatpush2.msra.mxu0 0.0
    %189 = vmatprep.subr.mxu0 0.0
    %190 = vmatpush2.msra.mxu0 0.0
    %191 = vmatprep.subr.mxu0 0.0
    %192 = vmatpush2.msra.mxu0 0.0
    %193 = vmatprep.subr.mxu0 0.0
    %194 = vmatpush2.msra.mxu0 0.0
    %195 = vmatprep.subr.mxu0 0.0
    %196 = vmatpush2.msra.mxu0 0.0
    %197 = vmatprep.subr.mxu0 0.0
    %198 = vmatpush2.msra.mxu0 0.0
    %199 = vmatprep.subr.mxu0 0.0
    %200 = vmatpush2.msra.mxu0 0.0
    %201 = vmatprep.subr.mxu0 0.0
    %202 = vmatpush2.msra.mxu0 0.0
    %203 = vmatprep.subr.mxu0 0.0
    %204 = vmatpush2.msra.mxu0 0.0
    %205 = vmatprep.subr.mxu0 0.0
    %206 = vmatpush2.msra.mxu0 0.0
    %207 = vmatprep.subr.mxu0 0.0
    %208 = vmatpush2.msra.mxu0 0.0
    %209 = vmatprep.subr.mxu0 0.0
    %210 = vmatpush2.msra.mxu0 0.0
    %211 = vmatprep.subr.mxu0 0.0
    %212 = vmatpush2.msra.mxu0 0.0
    %213 = vmatprep.subr.mxu0 0.0
    %214 = vmatpush2.msra.mxu0 0.0
    %215 = vmatprep.mubr.f32.mxu0 0.0
    %216 = vmatmul.mubr.f32.gmra.mxu0 %v149
    %v217 = vpop.f32.mrf.mxu0
    %v218 = vadd.f32 0.0, %v217
    %v219 = vpop.f32.mrf.mxu0
    %v220 = vadd.f32 0.0, %v219
    %221 = vdwg.mxu0
    %v222 = vmin.f32 %v142, %v144
    %v223 = vmax.f32 %v218, %v220
    %v224 = vsub.f32 %v222, %v223
    %v225 = vmax.f32 %v224, 0.0
    %v226 = vld [vmem:[#allocation8] sm:$0xff]
    %v227 = vld [vmem:[#allocation8 + $0x8] sm:$0xff]
    %v228 = vld [vmem:[#allocation8 + $0x10] sm:$0xff]
    %v229 = vld [vmem:[#allocation8 + $0x18] sm:$0xff]
    %v230 = vld [vmem:[#allocation8 + $0x20] sm:$0xff]
    %v231 = vld [vmem:[#allocation8 + $0x28] sm:$0xff]
    %v232 = vld [vmem:[#allocation8 + $0x30] sm:$0xff]
    %v233 = vld [vmem:[#allocation8 + $0x38] sm:$0xff]
    %v234 = vld [vmem:[#allocation8 + $0x40] sm:$0xff]
    %v235 = vld [vmem:[#allocation8 + $0x48] sm:$0xff]
    %v236 = vld [vmem:[#allocation8 + $0x50] sm:$0xff]
    %v237 = vld [vmem:[#allocation8 + $0x58] sm:$0xff]
    %v238 = vld [vmem:[#allocation8 + $0x60] sm:$0xff]
    %v239 = vld [vmem:[#allocation8 + $0x68] sm:$0xff]
    %v240 = vld [vmem:[#allocation8 + $0x70] sm:$0xff]
    %v241 = vld [vmem:[#allocation8 + $0x78] sm:$0xff]
    %242 = vmatprep.subr.mxu0 0.0
    %243 = vmatpush1.msra.mxu0 %v241
    %244 = vmatprep.subr.mxu0 0.0
    %245 = vmatpush1.msra.mxu0 %v240
    %246 = vmatprep.subr.mxu0 0.0
    %247 = vmatpush1.msra.mxu0 %v239
    %248 = vmatprep.subr.mxu0 0.0
    %249 = vmatpush1.msra.mxu0 %v238
    %250 = vmatprep.subr.mxu0 0.0
    %251 = vmatpush1.msra.mxu0 %v237
    %252 = vmatprep.subr.mxu0 0.0
    %253 = vmatpush1.msra.mxu0 %v236
    %254 = vmatprep.subr.mxu0 0.0
    %255 = vmatpush1.msra.mxu0 %v235
    %256 = vmatprep.subr.mxu0 0.0
    %257 = vmatpush1.msra.mxu0 %v234
    %258 = vmatprep.subr.mxu0 0.0
    %259 = vmatpush1.msra.mxu0 %v233
    %260 = vmatprep.subr.mxu0 0.0
    %261 = vmatpush1.msra.mxu0 %v232
    %262 = vmatprep.subr.mxu0 0.0
    %263 = vmatpush1.msra.mxu0 %v231
    %264 = vmatprep.subr.mxu0 0.0
    %265 = vmatpush1.msra.mxu0 %v230
    %266 = vmatprep.subr.mxu0 0.0
    %267 = vmatpush1.msra.mxu0 %v229
    %268 = vmatprep.subr.mxu0 0.0
    %269 = vmatpush1.msra.mxu0 %v228
    %270 = vmatprep.subr.mxu0 0.0
    %271 = vmatpush1.msra.mxu0 %v227
    %272 = vmatprep.subr.mxu0 0.0
    %273 = vmatpush1.msra.mxu0 %v226
    %274 = vmatprep.subr.mxu0 0.0
    %275 = vmatpush2.msra.mxu0 0.0
    %276 = vmatprep.subr.mxu0 0.0
    %277 = vmatpush2.msra.mxu0 0.0
    %278 = vmatprep.subr.mxu0 0.0
    %279 = vmatpush2.msra.mxu0 0.0
    %280 = vmatprep.subr.mxu0 0.0
    %281 = vmatpush2.msra.mxu0 0.0
    %282 = vmatprep.subr.mxu0 0.0
    %283 = vmatpush2.msra.mxu0 0.0
    %284 = vmatprep.subr.mxu0 0.0
    %285 = vmatpush2.msra.mxu0 0.0
    %286 = vmatprep.subr.mxu0 0.0
    %287 = vmatpush2.msra.mxu0 0.0
    %288 = vmatprep.subr.mxu0 0.0
    %289 = vmatpush2.msra.mxu0 0.0
    %290 = vmatprep.subr.mxu0 0.0
    %291 = vmatpush2.msra.mxu0 0.0
    %292 = vmatprep.subr.mxu0 0.0
    %293 = vmatpush2.msra.mxu0 0.0
    %294 = vmatprep.subr.mxu0 0.0
    %295 = vmatpush2.msra.mxu0 0.0
    %296 = vmatprep.subr.mxu0 0.0
    %297 = vmatpush2.msra.mxu0 0.0
    %298 = vmatprep.subr.mxu0 0.0
    %299 = vmatpush2.msra.mxu0 0.0
    %300 = vmatprep.subr.mxu0 0.0
    %301 = vmatpush2.msra.mxu0 0.0
    %302 = vmatprep.subr.mxu0 0.0
    %303 = vmatpush2.msra.mxu0 0.0
    %304 = vmatprep.subr.mxu0 0.0
    %305 = vmatpush2.msra.mxu0 0.0
    %306 = vmatprep.mubr.f32.mxu0 0.0
    %307 = vmatmul.mubr.f32.gmra.mxu0 %v225
    %v308 = vpop.f32.mrf.mxu0
    %v309 = vadd.f32 0.0, %v308
    %v310 = vpop.f32.mrf.mxu0
    %311 = vdwg.mxu0
    %312 = vst [vmem:[#allocation10] sm:$0xff] %v309
    // Predicated region
    $region34: #{tpu_custom_call.1} parent=1 // pred_check
      _
    $region35: #{tpu_custom_call.1} parent=1 // pred_check_branch
      %314 = sbr.rel (0) target = $region37
    $region36: #{tpu_custom_call.1} parent=1 // pred_region
      %s316 = ssub.s32 128, 128
      %317 = vsyncadd [#allocation4], %s316
      %s319 = sshll.u32 [#allocation10], 4
      %s320 = int_to_ptr.vmem [resolvable:$true] %s319
      %322 = dma.vmem_to_hbm [thread:$0]  %s320, 128, %s4, [#allocation4]
    $region37: #{tpu_custom_call.1} parent=1 // pred_fallthru
      _
    // Predicated region
    $region38: #{tpu_custom_call.1} parent=1 // pred_check
      _
    $region39: #{tpu_custom_call.1} parent=1 // pred_check_branch
      %324 = sbr.rel (0) target = $region41
    $region40: #{tpu_custom_call.1} parent=1 // pred_region
      %325 = dma.done [#allocation4], 128
    $region41: #{tpu_custom_call.1} parent=1 // pred_fallthru
      _
    %326 = vsyncpa [#allocation3], 1
    %327 = vsyncpa [#allocation6], 1
    %328 = vsyncpa [#allocation9], 1
    %329 = vsyncpa [#allocation4], 1

</llo_original>
